<compile_context>
chip_gen: v7x
topology: tpu7x:2x2x1
jax: 0.10.0
libtpu: 0.0.40
codegen_flags: <defaults>
</compile_context>

<pallas_src>
import jax
import jax.numpy as jnp
from jax.experimental import pallas as pl
from jax.experimental.pallas import tpu as pltpu


def _round_up(x, m):
    return (x + m - 1) // m * m


def nbow_kernel(ids_ref, wf_ref, b_ref, out_ref):
    ids = ids_ref[...]                      # [bt, S] int32
    bt, seq_len = ids.shape
    v_pad = wf_ref.shape[0]

    # Bag-of-words counts: counts[b, v] = #{s : ids[b, s] == v}.
    # Lane-dense [bt, V_pad] accumulator, seq_len compare+adds (pure VALU work,
    # no XLU reduction, no 3-D one-hot intermediate).  iota is hoisted once.
    iota_v = jax.lax.broadcasted_iota(jnp.int32, (bt, v_pad), 1)
    counts = jnp.zeros((bt, v_pad), jnp.float32)
    for s in range(seq_len):                # static unroll; kernel is traced once
        counts = counts + (ids[:, s:s + 1] == iota_v).astype(jnp.float32)

    # Fused gather + mean-pool + linear:  logits = counts @ (emb @ W / S) + b.
    # counts are exact small integers, so the cast to the matmul dtype is
    # lossless (for bf16 as long as S <= 256); the MXU accumulates in f32.
    logits = jnp.dot(counts.astype(wf_ref.dtype), wf_ref[...],
                     preferred_element_type=jnp.float32)
    out_ref[...] = (logits + b_ref[...]).astype(out_ref.dtype)


def nbow_forward(ids, emb, w, b, *, batch_tile=128, matmul_dtype=jnp.bfloat16):
    """NBoW forward. ids [B,S] int32, emb [V,E] f32, w [E,O] f32, b [O]/[1,O] f32."""
    B, S = ids.shape
    V, E = emb.shape
    O = w.shape[-1]

    # counts <= S; bf16 represents integers exactly only up to 256.
    if S > 256 and jnp.dtype(matmul_dtype) == jnp.dtype(jnp.bfloat16):
        matmul_dtype = jnp.float32

    # --- Algebraic fusion of embedding table + mean-pool scale + fc weight ---
    wf = (emb.astype(jnp.float32) @ w.astype(jnp.float32)) * (1.0 / S)   # [V, O]

    # --- Lane-dense padding: vocab (K dim) and output (N dim) -> mult of 128 ---
    o_pad = _round_up(max(O, 128), 128)
    v_pad = _round_up(max(V, 128), 128)
    wf = jnp.pad(wf, ((0, v_pad - V), (0, o_pad - O))).astype(matmul_dtype)  # [V_pad, o_pad]
    b_p = jnp.pad(jnp.reshape(b, (1, O)).astype(jnp.float32),
                  ((0, 0), (0, o_pad - O)))                                  # [1, o_pad]

    # --- Batch tiling: pad batch to a multiple of the tile, slice afterwards ---
    bt = max(8, min(_round_up(batch_tile, 8), _round_up(B, 8)))
    b_padded = _round_up(B, bt)
    ids_p = jnp.pad(ids.astype(jnp.int32), ((0, b_padded - B), (0, 0)))
    grid = (b_padded // bt,)

    # Scoped-VMEM budget: double-buffered tiles + the [bt, V_pad] counts
    # intermediate, with 2x headroom, clamped well under v7x's 64 MiB physical.
    est = (2 * v_pad * o_pad * wf.dtype.itemsize      # Wf (2 buffers)
           + 2 * bt * S * 4                           # ids tiles
           + 2 * bt * o_pad * 4 + 2 * o_pad * 4       # out tiles + bias
           + bt * v_pad * 4)                          # counts intermediate
    vmem_limit = int(min(60 * 2**20, max(16 * 2**20, 2 * est)))

    out = pl.pallas_call(
        nbow_kernel,
        out_shape=jax.ShapeDtypeStruct((b_padded, o_pad), jnp.float32),
        grid_spec=pltpu.PrefetchScalarGridSpec(
            num_scalar_prefetch=0,
            grid=grid,
            in_specs=[
                pl.BlockSpec((bt, S), lambda i: (i, 0)),         # ids tile
                # Constant block index: DMA'd once, reused across all steps.
                pl.BlockSpec((v_pad, o_pad), lambda i: (0, 0)),  # fused weight Wf
                pl.BlockSpec((1, o_pad), lambda i: (0, 0)),      # bias
            ],
            out_specs=pl.BlockSpec((bt, o_pad), lambda i: (i, 0)),
        ),
        compiler_params=pltpu.CompilerParams(
            dimension_semantics=("parallel",),   # batch tiles split across TCs
            vmem_limit_bytes=vmem_limit,
        ),
    )(ids_p, wf, b_p)

    return out[:B, :O]


if __name__ == "__main__":
    # Small synthetic configuration consistent with the module's forward.
    vocab_size = 128
    embedding_dim = 64
    output_dim = 4
    pad_index = 1          # vocab['<pad>'] == 1 (specials = ['<unk>', '<pad>'])
    batch = 16
    seq_len = 8

    key = jax.random.PRNGKey(0)
    k_ids, k_emb, k_w, k_b = jax.random.split(key, 4)

    # Deterministic parameter init (synthetic; not a checkpoint load).
    emb = 0.1 * jax.random.normal(k_emb, (vocab_size, embedding_dim), jnp.float32)
    # nn.Embedding(padding_idx=pad_index): pad row is zeros.
    emb = emb.at[pad_index].set(0.0)
    w = 0.1 * jax.random.normal(k_w, (embedding_dim, output_dim), jnp.float32)
    b = 0.1 * jax.random.normal(k_b, (1, output_dim), jnp.float32)

    # Deterministic token ids, with some padding tokens sprinkled in.
    ids = jax.random.randint(k_ids, (batch, seq_len), 0, vocab_size, jnp.int32)
    ids = ids.at[:, -2:].set(pad_index)   # last two positions are <pad>

    out = nbow_forward(ids, emb, w, b)
    out = jax.block_until_ready(out)

    # Pure-JAX f32 reference (matches the PyTorch forward).
    ref_embedded = emb[ids]                       # [B, S, E]
    ref_pooled = ref_embedded.mean(axis=1)        # [B, E]
    ref = ref_pooled @ w + b                      # [B, O]
    assert out.shape == (batch, output_dim)
    # bf16 rounding of the fused weight operand gives ~1e-4 abs error on these
    # logits (magnitude ~0.1); counts themselves are exact in bf16.
    assert jnp.allclose(out, ref, atol=5e-3, rtol=5e-3), \
        float(jnp.max(jnp.abs(out - ref)))

    print("KERNEL_OK")
</pallas_src>

<mosaic_0001>
module attributes {stable_mosaic.version = 11 : i64} {
  func.func @nbow_kernel(%arg0: i32, %arg1: memref<16x8xi32, #tpu.memory_space<vmem>>, %arg2: memref<128x128xbf16, #tpu.memory_space<vmem>>, %arg3: memref<1x128xf32, #tpu.memory_space<vmem>>, %arg4: memref<16x128xf32, #tpu.memory_space<vmem>>) attributes {dimension_semantics = [#tpu.dimension_semantics<parallel>], iteration_bounds = array<i64: 1>, scalar_prefetch = 0 : i64, scratch_operands = 0 : i64, tpu.core_type = #tpu.core_type<tc>, window_params = [{transform_indices = @transform_0, window_bounds = array<i64: 16, 8>}, {pipeline_mode = #tpu.pipeline_mode<synchronous>, transform_indices = @transform_1, window_bounds = array<i64: 128, 128>}, {pipeline_mode = #tpu.pipeline_mode<synchronous>, transform_indices = @transform_2, window_bounds = array<i64: 1, 128>}, {transform_indices = @transform_3, window_bounds = array<i64: 16, 128>}]} {
    %c0 = arith.constant 0 : index
    %c0_0 = arith.constant 0 : index
    %0 = vector.load %arg1[%c0, %c0_0] : memref<16x8xi32, #tpu.memory_space<vmem>>, vector<16x8xi32>
    %1 = tpu.iota {dimensions = array<i32: 1>} : vector<16x128xi32>
    %cst = arith.constant 0.000000e+00 : f32
    %2 = vector.broadcast %cst : f32 to vector<16x128xf32>
    %3 = vector.extract_strided_slice %0 {offsets = [0, 0], sizes = [16, 1], strides = [1, 1]} : vector<16x8xi32> to vector<16x1xi32>
    %4 = vector.broadcast %3 : vector<16x1xi32> to vector<16x128xi32>
    %5 = arith.cmpi eq, %4, %1 : vector<16x128xi32>
    %6 = arith.extui %5 : vector<16x128xi1> to vector<16x128xi32>
    %7 = arith.sitofp %6 : vector<16x128xi32> to vector<16x128xf32>
    %8 = arith.addf %2, %7 : vector<16x128xf32>
    %9 = vector.extract_strided_slice %0 {offsets = [0, 1], sizes = [16, 1], strides = [1, 1]} : vector<16x8xi32> to vector<16x1xi32>
    %10 = vector.broadcast %9 : vector<16x1xi32> to vector<16x128xi32>
    %11 = arith.cmpi eq, %10, %1 : vector<16x128xi32>
    %12 = arith.extui %11 : vector<16x128xi1> to vector<16x128xi32>
    %13 = arith.sitofp %12 : vector<16x128xi32> to vector<16x128xf32>
    %14 = arith.addf %8, %13 : vector<16x128xf32>
    %15 = vector.extract_strided_slice %0 {offsets = [0, 2], sizes = [16, 1], strides = [1, 1]} : vector<16x8xi32> to vector<16x1xi32>
    %16 = vector.broadcast %15 : vector<16x1xi32> to vector<16x128xi32>
    %17 = arith.cmpi eq, %16, %1 : vector<16x128xi32>
    %18 = arith.extui %17 : vector<16x128xi1> to vector<16x128xi32>
    %19 = arith.sitofp %18 : vector<16x128xi32> to vector<16x128xf32>
    %20 = arith.addf %14, %19 : vector<16x128xf32>
    %21 = vector.extract_strided_slice %0 {offsets = [0, 3], sizes = [16, 1], strides = [1, 1]} : vector<16x8xi32> to vector<16x1xi32>
    %22 = vector.broadcast %21 : vector<16x1xi32> to vector<16x128xi32>
    %23 = arith.cmpi eq, %22, %1 : vector<16x128xi32>
    %24 = arith.extui %23 : vector<16x128xi1> to vector<16x128xi32>
    %25 = arith.sitofp %24 : vector<16x128xi32> to vector<16x128xf32>
    %26 = arith.addf %20, %25 : vector<16x128xf32>
    %27 = vector.extract_strided_slice %0 {offsets = [0, 4], sizes = [16, 1], strides = [1, 1]} : vector<16x8xi32> to vector<16x1xi32>
    %28 = vector.broadcast %27 : vector<16x1xi32> to vector<16x128xi32>
    %29 = arith.cmpi eq, %28, %1 : vector<16x128xi32>
    %30 = arith.extui %29 : vector<16x128xi1> to vector<16x128xi32>
    %31 = arith.sitofp %30 : vector<16x128xi32> to vector<16x128xf32>
    %32 = arith.addf %26, %31 : vector<16x128xf32>
    %33 = vector.extract_strided_slice %0 {offsets = [0, 5], sizes = [16, 1], strides = [1, 1]} : vector<16x8xi32> to vector<16x1xi32>
    %34 = vector.broadcast %33 : vector<16x1xi32> to vector<16x128xi32>
    %35 = arith.cmpi eq, %34, %1 : vector<16x128xi32>
    %36 = arith.extui %35 : vector<16x128xi1> to vector<16x128xi32>
    %37 = arith.sitofp %36 : vector<16x128xi32> to vector<16x128xf32>
    %38 = arith.addf %32, %37 : vector<16x128xf32>
    %39 = vector.extract_strided_slice %0 {offsets = [0, 6], sizes = [16, 1], strides = [1, 1]} : vector<16x8xi32> to vector<16x1xi32>
    %40 = vector.broadcast %39 : vector<16x1xi32> to vector<16x128xi32>
    %41 = arith.cmpi eq, %40, %1 : vector<16x128xi32>
    %42 = arith.extui %41 : vector<16x128xi1> to vector<16x128xi32>
    %43 = arith.sitofp %42 : vector<16x128xi32> to vector<16x128xf32>
    %44 = arith.addf %38, %43 : vector<16x128xf32>
    %45 = vector.extract_strided_slice %0 {offsets = [0, 7], sizes = [16, 1], strides = [1, 1]} : vector<16x8xi32> to vector<16x1xi32>
    %46 = vector.broadcast %45 : vector<16x1xi32> to vector<16x128xi32>
    %47 = arith.cmpi eq, %46, %1 : vector<16x128xi32>
    %48 = arith.extui %47 : vector<16x128xi1> to vector<16x128xi32>
    %49 = arith.sitofp %48 : vector<16x128xi32> to vector<16x128xf32>
    %50 = arith.addf %44, %49 : vector<16x128xf32>
    %51 = arith.truncf %50 : vector<16x128xf32> to vector<16x128xbf16>
    %c0_1 = arith.constant 0 : index
    %c0_2 = arith.constant 0 : index
    %52 = vector.load %arg2[%c0_1, %c0_2] : memref<128x128xbf16, #tpu.memory_space<vmem>>, vector<128x128xbf16>
    %cst_3 = arith.constant dense<0.000000e+00> : vector<16x128xf32>
    %53 = tpu.matmul %51, %52, %cst_3 {dimension_numbers = #tpu.dot_dimension_numbers<[1], [0], [0], [1], [0, 0, 1, 1], [], []>} : vector<16x128xbf16>, vector<128x128xbf16>, vector<16x128xf32> -> vector<16x128xf32>
    %c0_4 = arith.constant 0 : index
    %c0_5 = arith.constant 0 : index
    %54 = vector.load %arg3[%c0_4, %c0_5] : memref<1x128xf32, #tpu.memory_space<vmem>>, vector<1x128xf32>
    %55 = vector.broadcast %54 : vector<1x128xf32> to vector<16x128xf32>
    %56 = arith.addf %53, %55 : vector<16x128xf32>
    %c0_6 = arith.constant 0 : index
    %c0_7 = arith.constant 0 : index
    %57 = vector.load %arg4[%c0_6, %c0_7] : memref<16x128xf32, #tpu.memory_space<vmem>>, vector<16x128xf32>
    tpu.vector_store %arg4[%c0_6, %c0_7], %56 {strides = array<i32>} : memref<16x128xf32, #tpu.memory_space<vmem>>, vector<16x128xf32>,
    return
  }
  func.func @transform_0(%arg0: i32) -> (i32, i32) {
    %c0_i32 = arith.constant 0 : i32
    %c0_i32_0 = arith.constant 0 : i32
    return %arg0, %c0_i32 : i32, i32
  }
  func.func @transform_1(%arg0: i32) -> (i32, i32) {
    %c0_i32 = arith.constant 0 : i32
    %c0_i32_0 = arith.constant 0 : i32
    %c0_i32_1 = arith.constant 0 : i32
    return %c0_i32, %c0_i32_0 : i32, i32
  }
  func.func @transform_2(%arg0: i32) -> (i32, i32) {
    %c0_i32 = arith.constant 0 : i32
    %c0_i32_0 = arith.constant 0 : i32
    %c0_i32_1 = arith.constant 0 : i32
    return %c0_i32, %c0_i32_0 : i32, i32
  }
  func.func @transform_3(%arg0: i32) -> (i32, i32) {
    %c0_i32 = arith.constant 0 : i32
    %c0_i32_0 = arith.constant 0 : i32
    return %arg0, %c0_i32 : i32, i32
  }
}

</mosaic_0001>

<llo_original>
// kernel: tpu_custom_call.1
$region0: #{tpu_custom_call.1}
  #allocation0 [shape = 'u32[]', space=smem, size = 0x4, offset = 0x4, fixed_abs, tag = 'smem constant byte address 0x4 - core index']
  #allocation1 [shape = 'u32[144,128]{1,0:T(1,128)}', space=vmem, size = 0x12000, scoped, tag = 'internal scratch']
  %s0 = inlined_call_operand.vmem [shape: s32[16,8], index: 0, kind: input, shape index: {}]
  %s1 = inlined_call_operand.hbm [shape: bf16[128,128], index: 1, kind: input, shape index: {}]
  %s2 = inlined_call_operand.vmem [shape: f32[1,128], index: 2, kind: input, shape index: {}]
  %s3 = inlined_call_operand.hbm [shape: f32[16,128], index: 3, kind: output, shape index: {}]
  %s4 = sld [smem:[#allocation0]]
  $region26: #{tpu_custom_call.1} parent=0
    _
  %s6 = ssub.s32 1, %s4
  %s7 = scalar_select 0, %s6, %s4
  $region1: #{tpu_custom_call.1} parent=0
    #allocation2 [shape = 'u8[32768]{0}', space=vmem, size = 0x8000, scoped, tag = 'input window, operand 1, single buffered']
    #allocation3 [shape = 's32[1]{0}', space=sflag, size = 0x4, scoped, tag = 'scoped memory for tpu_custom_call.1']
    #allocation4 [shape = 's32[1]{0}', space=sflag, size = 0x4, scoped, tag = 'scoped memory for tpu_custom_call.1']
    #allocation5 [shape = 'u8[8192]{0}', space=vmem, size = 0x2000, scoped, tag = 'output window, operand 0, single buffered']
    %8 = vsyncpa [#allocation3], 0
    %9 = vsyncpa [#allocation4], 0
    // Predicated region
    $region2: #{tpu_custom_call.1} parent=1 // pred_check
      _
    $region3: #{tpu_custom_call.1} parent=1 // pred_check_branch
      %11 = sbr.rel (0) target = $region5
    $region4: #{tpu_custom_call.1} parent=1 // pred_region
      _
    $region5: #{tpu_custom_call.1} parent=1 // pred_fallthru
      _
    // Predicated region
    $region6: #{tpu_custom_call.1} parent=1 // pred_check
      _
    $region7: #{tpu_custom_call.1} parent=1 // pred_check_branch
      %13 = sbr.rel (0) target = $region9
    $region8: #{tpu_custom_call.1} parent=1 // pred_region
      %s15 = ssub.s32 1024, 1024
      %16 = vsyncadd [#allocation3], %s15
      %s17 = sshll.u32 [#allocation2], 4
      %s18 = int_to_ptr.vmem [resolvable:$true] %s17
      %23 = dma.hbm_to_vmem [thread:$0]  %s1, 1024, %s18, [#allocation3], 64, 64, 4
    $region9: #{tpu_custom_call.1} parent=1 // pred_fallthru
      _
    // Predicated region
    $region10: #{tpu_custom_call.1} parent=1 // pred_check
      _
    $region11: #{tpu_custom_call.1} parent=1 // pred_check_branch
      %25 = sbr.rel (0) target = $region13
    $region12: #{tpu_custom_call.1} parent=1 // pred_region
      _
    $region13: #{tpu_custom_call.1} parent=1 // pred_fallthru
      _
    // Predicated region
    $region14: #{tpu_custom_call.1} parent=1 // pred_check
      _
    $region15: #{tpu_custom_call.1} parent=1 // pred_check_branch
      %27 = sbr.rel (0) target = $region17
    $region16: #{tpu_custom_call.1} parent=1 // pred_region
      %28 = dma.done [#allocation3], 1024
    $region17: #{tpu_custom_call.1} parent=1 // pred_fallthru
      _
    %v30 = vld [vmem:[%s0] sm:$0xff]
    %v31 = vld [vmem:[%s0 + $0x8] sm:$0xff]
    %v32 = vlaneseq
    %v33 = vand.u32 %v32, 127
    %34 = vset.pattern.permute.xlu0 0
    %35 = vperm.xlu0 %34, %v30
    %v36 = vpop.permute.xlu0 %35
    %37 = vset.pattern.permute.xlu0 0
    %38 = vperm.xlu0 %37, %v31
    %v39 = vpop.permute.xlu0 %38
    %vm40 = vcmp.eq.s32.totalorder %v36, %v33
    %vm41 = vcmp.eq.s32.totalorder %v39, %v33
    %v42 = vsel %vm40, 1, 0
    %v43 = vsel %vm41, 1, 0
    %v44 = vcvt.s32.f32 %v42
    %v45 = vcvt.s32.f32 %v43
    %v46 = vadd.f32 %v44, 0.0
    %v47 = vadd.f32 %v45, 0.0
    %48 = vset.pattern.permute.xlu0 1
    %49 = vperm.xlu0 %48, %v30
    %v50 = vpop.permute.xlu0 %49
    %51 = vset.pattern.permute.xlu0 1
    %52 = vperm.xlu0 %51, %v31
    %v53 = vpop.permute.xlu0 %52
    %vm54 = vcmp.eq.s32.totalorder %v50, %v33
    %vm55 = vcmp.eq.s32.totalorder %v53, %v33
    %v56 = vsel %vm54, 1, 0
    %v57 = vsel %vm55, 1, 0
    %v58 = vcvt.s32.f32 %v56
    %v59 = vcvt.s32.f32 %v57
    %v60 = vadd.f32 %v46, %v58
    %v61 = vadd.f32 %v47, %v59
    %62 = vset.pattern.permute.xlu0 2
    %63 = vperm.xlu0 %62, %v30
    %v64 = vpop.permute.xlu0 %63
    %65 = vset.pattern.permute.xlu0 2
    %66 = vperm.xlu0 %65, %v31
    %v67 = vpop.permute.xlu0 %66
    %vm68 = vcmp.eq.s32.totalorder %v64, %v33
    %vm69 = vcmp.eq.s32.totalorder %v67, %v33
    %v70 = vsel %vm68, 1, 0
    %v71 = vsel %vm69, 1, 0
    %v72 = vcvt.s32.f32 %v70
    %v73 = vcvt.s32.f32 %v71
    %v74 = vadd.f32 %v60, %v72
    %v75 = vadd.f32 %v61, %v73
    %76 = vset.pattern.permute.xlu0 3
    %77 = vperm.xlu0 %76, %v30
    %v78 = vpop.permute.xlu0 %77
    %79 = vset.pattern.permute.xlu0 3
    %80 = vperm.xlu0 %79, %v31
    %v81 = vpop.permute.xlu0 %80
    %vm82 = vcmp.eq.s32.totalorder %v78, %v33
    %vm83 = vcmp.eq.s32.totalorder %v81, %v33
    %v84 = vsel %vm82, 1, 0
    %v85 = vsel %vm83, 1, 0
    %v86 = vcvt.s32.f32 %v84
    %v87 = vcvt.s32.f32 %v85
    %v88 = vadd.f32 %v74, %v86
    %v89 = vadd.f32 %v75, %v87
    %90 = vset.pattern.permute.xlu0 4
    %91 = vperm.xlu0 %90, %v30
    %v92 = vpop.permute.xlu0 %91
    %93 = vset.pattern.permute.xlu0 4
    %94 = vperm.xlu0 %93, %v31
    %v95 = vpop.permute.xlu0 %94
    %vm96 = vcmp.eq.s32.totalorder %v92, %v33
    %vm97 = vcmp.eq.s32.totalorder %v95, %v33
    %v98 = vsel %vm96, 1, 0
    %v99 = vsel %vm97, 1, 0
    %v100 = vcvt.s32.f32 %v98
    %v101 = vcvt.s32.f32 %v99
    %v102 = vadd.f32 %v88, %v100
    %v103 = vadd.f32 %v89, %v101
    %104 = vset.pattern.permute.xlu0 5
    %105 = vperm.xlu0 %104, %v30
    %v106 = vpop.permute.xlu0 %105
    %107 = vset.pattern.permute.xlu0 5
    %108 = vperm.xlu0 %107, %v31
    %v109 = vpop.permute.xlu0 %108
    %vm110 = vcmp.eq.s32.totalorder %v106, %v33
    %vm111 = vcmp.eq.s32.totalorder %v109, %v33
    %v112 = vsel %vm110, 1, 0
    %v113 = vsel %vm111, 1, 0
    %v114 = vcvt.s32.f32 %v112
    %v115 = vcvt.s32.f32 %v113
    %v116 = vadd.f32 %v102, %v114
    %v117 = vadd.f32 %v103, %v115
    %118 = vset.pattern.permute.xlu0 6
    %119 = vperm.xlu0 %118, %v30
    %v120 = vpop.permute.xlu0 %119
    %121 = vset.pattern.permute.xlu0 6
    %122 = vperm.xlu0 %121, %v31
    %v123 = vpop.permute.xlu0 %122
    %vm124 = vcmp.eq.s32.totalorder %v120, %v33
    %vm125 = vcmp.eq.s32.totalorder %v123, %v33
    %v126 = vsel %vm124, 1, 0
    %v127 = vsel %vm125, 1, 0
    %v128 = vcvt.s32.f32 %v126
    %v129 = vcvt.s32.f32 %v127
    %v130 = vadd.f32 %v116, %v128
    %v131 = vadd.f32 %v117, %v129
    %132 = vset.pattern.permute.xlu0 7
    %133 = vperm.xlu0 %132, %v30
    %v134 = vpop.permute.xlu0 %133
    %135 = vset.pattern.permute.xlu0 7
    %136 = vperm.xlu0 %135, %v31
    %v137 = vpop.permute.xlu0 %136
    %vm138 = vcmp.eq.s32.totalorder %v134, %v33
    %vm139 = vcmp.eq.s32.totalorder %v137, %v33
    %v140 = vsel %vm138, 1, 0
    %v141 = vsel %vm139, 1, 0
    %v142 = vcvt.s32.f32 %v140
    %v143 = vcvt.s32.f32 %v141
    %v144 = vadd.f32 %v130, %v142
    %v145 = vadd.f32 %v131, %v143
    %v146 = vpack.c.bf16 %v145, %v144
    %v147 = vld [vmem:[#allocation2] sm:$0xf]
    %v148 = vld [vmem:[#allocation2 + $0x4] sm:$0xf]
    %v149 = vld [vmem:[#allocation2 + $0x8] sm:$0xf]
    %v150 = vld [vmem:[#allocation2 + $0xc] sm:$0xf]
    %v151 = vld [vmem:[#allocation2 + $0x10] sm:$0xf]
    %v152 = vld [vmem:[#allocation2 + $0x14] sm:$0xf]
    %v153 = vld [vmem:[#allocation2 + $0x18] sm:$0xf]
    %v154 = vld [vmem:[#allocation2 + $0x1c] sm:$0xf]
    %v155 = vld [vmem:[#allocation2 + $0x20] sm:$0xf]
    %v156 = vld [vmem:[#allocation2 + $0x24] sm:$0xf]
    %v157 = vld [vmem:[#allocation2 + $0x28] sm:$0xf]
    %v158 = vld [vmem:[#allocation2 + $0x2c] sm:$0xf]
    %v159 = vld [vmem:[#allocation2 + $0x30] sm:$0xf]
    %v160 = vld [vmem:[#allocation2 + $0x34] sm:$0xf]
    %v161 = vld [vmem:[#allocation2 + $0x38] sm:$0xf]
    %v162 = vld [vmem:[#allocation2 + $0x3c] sm:$0xf]
    %v163 = vld [vmem:[%s2] sm:$0x1]
    %v165 = vlaneseq
    %v166 = vshrl.u32 %v165, 7
    %v167 = vsub.s32 0, %v166
    %v168 = vrot.slane %v163, %v167
    %v186 = vunpack.c.l.b16 %v147
    %v187 = vunpack.c.l.b16 %v148
    %v188 = vunpack.c.l.b16 %v149
    %v189 = vunpack.c.l.b16 %v150
    %v190 = vunpack.c.l.b16 %v151
    %v191 = vunpack.c.l.b16 %v152
    %v192 = vunpack.c.l.b16 %v153
    %v193 = vunpack.c.l.b16 %v154
    %v194 = vunpack.c.l.b16 %v155
    %v195 = vunpack.c.l.b16 %v156
    %v196 = vunpack.c.l.b16 %v157
    %v197 = vunpack.c.l.b16 %v158
    %v198 = vunpack.c.l.b16 %v159
    %v199 = vunpack.c.l.b16 %v160
    %v200 = vunpack.c.l.b16 %v161
    %v201 = vunpack.c.l.b16 %v162
    %v202 = vpack.c.b16 %v187, %v186
    %v203 = vpack.c.b16 %v189, %v188
    %v204 = vpack.c.b16 %v191, %v190
    %v205 = vpack.c.b16 %v193, %v192
    %v206 = vpack.c.b16 %v195, %v194
    %v207 = vpack.c.b16 %v197, %v196
    %v208 = vpack.c.b16 %v199, %v198
    %v209 = vpack.c.b16 %v201, %v200
    %218 = vmatprep.subr.bf16.mxu0 0
    %219 = vmatpush1.bf16.msra.mxu0 %v202
    %220 = vmatprep.subr.bf16.mxu0 0
    %221 = vmatpush1.bf16.msra.mxu0 %v203
    %222 = vmatprep.subr.bf16.mxu0 0
    %223 = vmatpush1.bf16.msra.mxu0 %v204
    %224 = vmatprep.subr.bf16.mxu0 0
    %225 = vmatpush1.bf16.msra.mxu0 %v205
    %226 = vmatprep.subr.bf16.mxu0 0
    %227 = vmatpush1.bf16.msra.mxu0 %v206
    %228 = vmatprep.subr.bf16.mxu0 0
    %229 = vmatpush1.bf16.msra.mxu0 %v207
    %230 = vmatprep.subr.bf16.mxu0 0
    %231 = vmatpush1.bf16.msra.mxu0 %v208
    %232 = vmatprep.subr.bf16.mxu0 0
    %233 = vmatpush1.bf16.msra.mxu0 %v209
    %234 = vmatprep.subr.bf16.mxu0 0
    %235 = vmatpush1.bf16.msra.mxu0 0
    %236 = vmatprep.subr.bf16.mxu0 0
    %237 = vmatpush1.bf16.msra.mxu0 0
    %238 = vmatprep.subr.bf16.mxu0 0
    %239 = vmatpush1.bf16.msra.mxu0 0
    %240 = vmatprep.subr.bf16.mxu0 0
    %241 = vmatpush1.bf16.msra.mxu0 0
    %242 = vmatprep.subr.bf16.mxu0 0
    %243 = vmatpush1.bf16.msra.mxu0 0
    %244 = vmatprep.subr.bf16.mxu0 0
    %245 = vmatpush1.bf16.msra.mxu0 0
    %246 = vmatprep.subr.bf16.mxu0 0
    %247 = vmatpush1.bf16.msra.mxu0 0
    %248 = vmatprep.subr.bf16.mxu0 0
    %249 = vmatpush1.bf16.msra.mxu0 0
    %250 = vmatprep.mubr.bf16.mxu0 0
    %251 = vmatmul.mubr.bf16.gmra.mrb[0].mxu0 %v146
    %v252 = vpop.f32.mrb[0].mxu0
    %v253 = vadd.f32 %v168, %v252
    %v254 = vpop.f32.mrb[0].mxu0
    %v255 = vpop.f32.mrb[0].mxu0
    %v256 = vadd.f32 %v168, %v255
    %v257 = vpop.f32.mrb[0].mxu0
    %258 = vdwg.mxu0
    %259 = vst [vmem:[#allocation5] sm:$0xff] %v253
    %260 = vst [vmem:[#allocation5 + $0x8] sm:$0xff] %v256
    // Predicated region
    $region18: #{tpu_custom_call.1} parent=1 // pred_check
      _
    $region19: #{tpu_custom_call.1} parent=1 // pred_check_branch
      %262 = sbr.rel (0) target = $region21
    $region20: #{tpu_custom_call.1} parent=1 // pred_region
      %s264 = ssub.s32 256, 256
      %265 = vsyncadd [#allocation4], %s264
      %s266 = sshll.u32 [#allocation5], 4
      %s267 = int_to_ptr.vmem [resolvable:$true] %s266
      %272 = dma.vmem_to_hbm [thread:$0]  %s267, 256, %s3, [#allocation4], 128, 128, 8
    $region21: #{tpu_custom_call.1} parent=1 // pred_fallthru
      _
    // Predicated region
    $region22: #{tpu_custom_call.1} parent=1 // pred_check
      _
    $region23: #{tpu_custom_call.1} parent=1 // pred_check_branch
      %274 = sbr.rel (0) target = $region25
    $region24: #{tpu_custom_call.1} parent=1 // pred_region
      %275 = dma.done [#allocation4], 256
    $region25: #{tpu_custom_call.1} parent=1 // pred_fallthru
      _
    %276 = vsyncpa [#allocation3], 1
    %277 = vsyncpa [#allocation4], 1

</llo_original>
